<compile_context>
chip_gen: v5e
topology: v5e:2x2
jax: 0.10.0
libtpu: 0.0.40
codegen_flags: <defaults>
</compile_context>

<pallas_src>
import functools

import jax
import jax.numpy as jnp
from jax.experimental import pallas as pl
from jax.experimental.pallas import tpu as pltpu

NORM_EPS = 1e-5
MXU_DTYPE = jnp.bfloat16          # MXU feed dtype (accumulation stays f32)


# ----------------------------------------------------------------------------
# Small helpers (tile planning, padding, LayerNorm math)
# ----------------------------------------------------------------------------
def _round_up(x, m):
    return (x + m - 1) // m * m


def _vmem_capacity():
    """Physical VMEM per TensorCore (128 MiB on v5e/v6e, 64 MiB on v7x)."""
    try:
        cap = int(pltpu.get_tpu_info().vmem_capacity_bytes)
        if cap > 0:
            return cap
    except Exception:
        pass
    return 128 << 20


def _largest_aligned_divisor(total, cap):
    """Largest divisor of `total` that is a multiple of 256 (preferred: fills
    the 256-wide MXU on v6e/v7x) or 128 (fallback), capped at `cap`."""
    def best(step):
        found = None
        t = step
        hi = min(total, max(cap, step))
        while t <= hi:
            if total % t == 0:
                found = t
            t += step
        return found
    return best(256) or best(128) or min(total, 128)


def _block_plan(n, d, x_itemsize, w_itemsize, vmem_cap):
    """Pick (N_pad, D_pad, row tile tn, out-col tile tc, K tile tk).

    Panel caps are derived from physical VMEM so the plan shrinks on v7x
    (64 MiB/TC) relative to v5e/v6e (128 MiB). Rows are shrunk first.
    """
    d_pad = _round_up(d, 128)
    x_panel_cap = max(1 << 20, vmem_cap // 16)      # ~8 MiB @128MiB, ~4 MiB @64MiB
    w_panel_cap = max(512 << 10, vmem_cap // 32)    # ~4 MiB @128MiB, ~2 MiB @64MiB
    tn = 256
    while tn > 64 and tn * d_pad * max(x_itemsize, 4) > x_panel_cap:
        tn //= 2                                    # shrink rows before cols/K
    if n < tn:
        tn = _round_up(max(n, 1), 16)               # 16: safe sublane tile for bf16
    n_pad = _round_up(n, tn)
    tc = _largest_aligned_divisor(d_pad, 2048)      # output-column tile
    max_tk = max(256, w_panel_cap // max(tc * w_itemsize, 1))
    tk = _largest_aligned_divisor(d_pad, max_tk)    # K tile of the weight
    return n_pad, d_pad, tn, tc, tk


def _vmem_limit(est, cap):
    """Scoped-VMEM request: 2x the estimate, clamped below physical VMEM."""
    ceiling = max(32 << 20, min(cap - (8 << 20), cap * 7 // 8))
    return int(min(ceiling, max(32 << 20, 2 * est)))


def _ln_rows(x, d_real, d_pad):
    """Row-wise LayerNorm core on an f32 (rows, d_pad) tile.

    Columns >= d_real are padding: they are masked out of the statistics and
    come out as exact zeros, preserving the zero-padding invariant.
    """
    if d_real == d_pad:
        mean = jnp.mean(x, axis=-1, keepdims=True)
        c = x - mean
        var = jnp.mean(c * c, axis=-1, keepdims=True)
        return c * jax.lax.rsqrt(var + NORM_EPS)
    mask = jax.lax.broadcasted_iota(jnp.int32, x.shape, 1) < d_real
    inv_d = 1.0 / d_real
    xm = jnp.where(mask, x, 0.0)
    mean = jnp.sum(xm, axis=-1, keepdims=True) * inv_d
    c = jnp.where(mask, x - mean, 0.0)
    var = jnp.sum(c * c, axis=-1, keepdims=True) * inv_d
    return c * jax.lax.rsqrt(var + NORM_EPS)


# ----------------------------------------------------------------------------
# Pallas kernels
# ----------------------------------------------------------------------------
def _make_resident_block_kernel(*, d_real, d_pad, fuse_ln):
    """Whole (padded, bf16) W resident in VMEM; grid over row tiles only."""
    def kernel(*refs):
        refs = list(refs)
        x_ref = refs.pop(0)            # (tn, d_pad) activations
        g_ref = refs.pop(0)            # (1, d_pad) LN gamma
        b_ref = refs.pop(0)            # (1, d_pad) LN beta
        w_ref = refs.pop(0)            # (d_pad, d_pad) bf16 weight (resident)
        bias_ref = refs.pop(0)         # (1, d_pad) bias
        if fuse_ln:
            fg_ref = refs.pop(0)       # (1, d_pad) final-LN gamma
            fb_ref = refs.pop(0)       # (1, d_pad) final-LN beta
        o_ref = refs.pop(0)

        x = x_ref[...].astype(jnp.float32)
        h = _ln_rows(x, d_real, d_pad)
        h = h * g_ref[...].astype(jnp.float32) + b_ref[...].astype(jnp.float32)
        # bf16 x bf16 -> f32 on the MXU.
        y = jnp.dot(h.astype(w_ref.dtype), w_ref[...],
                    preferred_element_type=jnp.float32)
        y = y + x + bias_ref[...].astype(jnp.float32)
        if fuse_ln:
            y = _ln_rows(y, d_real, d_pad)
            y = (y * fg_ref[...].astype(jnp.float32)
                 + fb_ref[...].astype(jnp.float32))
        o_ref[...] = y.astype(o_ref.dtype)     # single fused store

    return kernel


def _make_tiled_block_kernel(*, d_real, d_pad, tc, tk, nk):
    """Streamed (tk, tc) weight panels; grid = (rows, out-cols, K)."""
    def kernel(x_ref, g_ref, b_ref, w_ref, bias_ref, o_ref, h_scr, acc_scr):
        j = pl.program_id(1)
        k = pl.program_id(2)

        # LayerNorm(x)*gamma+beta once per ROW tile (j==0 & k==0) into one
        # bf16 (tn, d_pad) scratch (no per-column-tile recompute, no repack).
        # j/k are "arbitrary" axes, so every core traverses j==0.
        @pl.when((k == 0) & (j == 0))
        def _():
            x = x_ref[...].astype(jnp.float32)
            h = _ln_rows(x, d_real, d_pad)
            h = (h * g_ref[...].astype(jnp.float32)
                 + b_ref[...].astype(jnp.float32))
            h_scr[...] = h.astype(h_scr.dtype)

        @pl.when(k == 0)
        def _():
            acc_scr[...] = jnp.zeros_like(acc_scr)

        # MXU: bf16 (tn, tk) x (tk, tc) panel product accumulated in f32.
        k_off = pl.multiple_of(k * tk, tk)
        acc_scr[...] += jnp.dot(h_scr[:, pl.ds(k_off, tk)], w_ref[...],
                                preferred_element_type=jnp.float32)

        # Epilogue: residual sliced from the already-resident full-width x
        # panel (no second HBM read) + bias; single fused store.
        @pl.when(k == nk - 1)
        def _():
            j_off = pl.multiple_of(j * tc, tc)
            xres = x_ref[:, pl.ds(j_off, tc)].astype(jnp.float32)
            y = acc_scr[...] + xres + bias_ref[...].astype(jnp.float32)
            o_ref[...] = y.astype(o_ref.dtype)

    return kernel


def _make_final_ln_kernel(*, d_real, d_pad):
    def kernel(x_ref, g_ref, b_ref, o_ref):
        x = x_ref[...].astype(jnp.float32)
        y = _ln_rows(x, d_real, d_pad)
        y = y * g_ref[...].astype(jnp.float32) + b_ref[...].astype(jnp.float32)
        o_ref[...] = y.astype(o_ref.dtype)
    return kernel


# ----------------------------------------------------------------------------
# pallas_call wrappers
# ----------------------------------------------------------------------------
def _mixer_block_resident(x_pad, gamma_p, beta_p, w_p, bias_p, *, d_real, tn,
                          vmem_cap, final_gamma=None, final_beta=None):
    """y = x + (LN(x)*g + b) @ W + bias, whole bf16 W resident in VMEM."""
    n_pad, d_pad = x_pad.shape
    fuse_ln = final_gamma is not None
    x_isz = jnp.dtype(x_pad.dtype).itemsize
    w_isz = jnp.dtype(w_p.dtype).itemsize

    in_specs = [
        pl.BlockSpec((tn, d_pad), lambda i: (i, 0)),      # activations (rows)
        pl.BlockSpec((1, d_pad), lambda i: (0, 0)),       # LN gamma
        pl.BlockSpec((1, d_pad), lambda i: (0, 0)),       # LN beta
        pl.BlockSpec((d_pad, d_pad), lambda i: (0, 0)),   # resident W (bf16)
        pl.BlockSpec((1, d_pad), lambda i: (0, 0)),       # bias
    ]
    operands = [x_pad, gamma_p, beta_p, w_p, bias_p]
    if fuse_ln:
        in_specs += [pl.BlockSpec((1, d_pad), lambda i: (0, 0)),
                     pl.BlockSpec((1, d_pad), lambda i: (0, 0))]
        operands += [final_gamma, final_beta]

    est = (2 * tn * d_pad * x_isz          # x row panel (double buffered)
           + 2 * d_pad * d_pad * w_isz     # resident weight (2 buffers, worst case)
           + 2 * tn * d_pad * x_isz        # output tile
           + 2 * tn * d_pad * 4            # f32 LN / matmul temporaries
           + 16 * d_pad * 4)               # gammas / betas / bias

    kernel = _make_resident_block_kernel(d_real=d_real, d_pad=d_pad,
                                         fuse_ln=fuse_ln)
    return pl.pallas_call(
        kernel,
        out_shape=jax.ShapeDtypeStruct((n_pad, d_pad), x_pad.dtype),
        grid=(n_pad // tn,),
        in_specs=in_specs,
        out_specs=pl.BlockSpec((tn, d_pad), lambda i: (i, 0)),
        input_output_aliases={0: 0},
        compiler_params=pltpu.CompilerParams(
            dimension_semantics=("parallel",),
            vmem_limit_bytes=_vmem_limit(est, vmem_cap)),
    )(*operands)


def _mixer_block_tiled(x_pad, gamma_p, beta_p, w_p, bias_p, *, d_real, tn, tc,
                       tk, vmem_cap):
    """y = x + (LN(x)*g + b) @ W + bias with streamed (tk, tc) weight panels."""
    n_pad, d_pad = x_pad.shape
    nk = d_pad // tk
    grid = (n_pad // tn, d_pad // tc, nk)
    x_isz = jnp.dtype(x_pad.dtype).itemsize
    w_isz = jnp.dtype(w_p.dtype).itemsize

    # TODO(synk): if profiling shows the per-K weight DMA exposed, deepen the
    # weight-panel pipelining with pipeline_mode=pl.Buffered(3).
    in_specs = [
        pl.BlockSpec((tn, d_pad), lambda i, j, k: (i, 0)),   # activations (full row)
        pl.BlockSpec((1, d_pad), lambda i, j, k: (0, 0)),    # LN gamma
        pl.BlockSpec((1, d_pad), lambda i, j, k: (0, 0)),    # LN beta
        pl.BlockSpec((tk, tc), lambda i, j, k: (k, j)),      # weight panel (bf16)
        pl.BlockSpec((1, tc), lambda i, j, k: (0, j)),       # bias tile
    ]

    est = (2 * tn * d_pad * x_isz          # x row panel (double buffered)
           + 2 * tk * tc * w_isz           # weight panel (double buffered)
           + 2 * tc * w_isz                # bias tile
           + 8 * d_pad * x_isz             # gammas / betas
           + 2 * tn * tc * x_isz           # output tile
           + tn * d_pad * 2                # normalized-h scratch (bf16)
           + tn * tc * 4                   # f32 accumulator
           + 2 * tn * d_pad * 4)           # LN temporaries

    kernel = _make_tiled_block_kernel(d_real=d_real, d_pad=d_pad, tc=tc, tk=tk,
                                      nk=nk)
    return pl.pallas_call(
        kernel,
        out_shape=jax.ShapeDtypeStruct((n_pad, d_pad), x_pad.dtype),
        grid=grid,
        in_specs=in_specs,
        out_specs=pl.BlockSpec((tn, tc), lambda i, j, k: (i, j)),
        scratch_shapes=[pltpu.VMEM((tn, d_pad), MXU_DTYPE),   # normalized h
                        pltpu.VMEM((tn, tc), jnp.float32)],   # f32 accumulator
        input_output_aliases={0: 0},
        # Only the row axis is core-parallel: with in-place aliasing and
        # full-width x reads, sharding the column axis across v7x's two cores
        # would be a cross-core hazard and would break the j==0 LN hoist.
        compiler_params=pltpu.CompilerParams(
            dimension_semantics=("parallel", "arbitrary", "arbitrary"),
            vmem_limit_bytes=_vmem_limit(est, vmem_cap)),
    )(x_pad, gamma_p, beta_p, w_p, bias_p)


def _final_layernorm(x_pad, gamma_p, beta_p, *, d_real, tn, vmem_cap):
    """Standalone final LayerNorm (used when fusion is not possible)."""
    n_pad, d_pad = x_pad.shape
    x_isz = jnp.dtype(x_pad.dtype).itemsize
    est = 4 * tn * d_pad * x_isz + 8 * d_pad * x_isz + 2 * tn * d_pad * 4
    return pl.pallas_call(
        _make_final_ln_kernel(d_real=d_real, d_pad=d_pad),
        out_shape=jax.ShapeDtypeStruct((n_pad, d_pad), x_pad.dtype),
        grid=(n_pad // tn,),
        in_specs=[pl.BlockSpec((tn, d_pad), lambda i: (i, 0)),
                  pl.BlockSpec((1, d_pad), lambda i: (0, 0)),
                  pl.BlockSpec((1, d_pad), lambda i: (0, 0))],
        out_specs=pl.BlockSpec((tn, d_pad), lambda i: (i, 0)),
        input_output_aliases={0: 0},
        compiler_params=pltpu.CompilerParams(
            dimension_semantics=("parallel",),
            vmem_limit_bytes=_vmem_limit(est, vmem_cap)),
    )(x_pad, gamma_p, beta_p)


# ----------------------------------------------------------------------------
# Model: parameter init + padding/casting prep + forward
# ----------------------------------------------------------------------------
def init_params(key, input_size, d_model, n_layer, dtype=jnp.float32):
    keys = jax.random.split(key, 2 * n_layer + 1)
    params = {
        "embedding": jax.random.normal(keys[0], (input_size, d_model), dtype) * 0.02,
        "layers": [],
        "final_ln_gamma": jnp.ones((1, d_model), dtype),
        "final_ln_beta": jnp.zeros((1, d_model), dtype),
    }
    for i in range(n_layer):
        w = jax.random.normal(keys[1 + 2 * i], (d_model, d_model), dtype) * (d_model ** -0.5)
        b = jax.random.normal(keys[2 + 2 * i], (1, d_model), dtype) * 0.01
        params["layers"].append({
            "ln_gamma": jnp.ones((1, d_model), dtype),
            "ln_beta": jnp.zeros((1, d_model), dtype),
            "w": w,
            "b": b,
        })
    return params


def prepare_params(params):
    """Pad all per-layer tensors to D_pad (multiple of 128) and cast weights
    to bf16 ONCE — no per-forward jnp.pad of every layer's W."""
    d = params["embedding"].shape[1]
    d_pad = _round_up(d, 128)
    pc = d_pad - d
    prepped = {
        "embedding": params["embedding"],
        "final_ln_gamma": jnp.pad(params["final_ln_gamma"], ((0, 0), (0, pc))),
        "final_ln_beta": jnp.pad(params["final_ln_beta"], ((0, 0), (0, pc))),
        "layers": [],
    }
    for layer in params["layers"]:
        prepped["layers"].append({
            "ln_gamma": jnp.pad(layer["ln_gamma"], ((0, 0), (0, pc))),
            "ln_beta": jnp.pad(layer["ln_beta"], ((0, 0), (0, pc))),
            "w": jnp.pad(layer["w"], ((0, pc), (0, pc))).astype(MXU_DTYPE),
            "b": jnp.pad(layer["b"], ((0, 0), (0, pc))),
        })
    return prepped


@functools.partial(
    jax.jit, static_argnames=("d_model", "return_hidden_states", "force_tiled"))
def mixer_model_forward(params, input_ids, *, d_model,
                        return_hidden_states=False, force_tiled=False):
    """Forward pass matching MixerModel.forward semantics.

    `params` are the prepared (padded / bf16-cast) parameters.
    input_ids: (B, S) int32; returns dict with 'last_hidden_state' (B, S, D).
    """
    b, s = input_ids.shape
    d = d_model
    n = b * s
    n_layers = len(params["layers"])

    # Embedding lookup (glue, plain-JAX gather).
    # TODO(synk): could become a Pallas DMA-gather kernel; it is pure memory traffic.
    hidden = jnp.take(params["embedding"], input_ids.reshape(-1), axis=0)

    outputs = {
        "last_hidden_state": None,
        "all_hidden_states": (hidden.reshape(b, s, d),) if return_hidden_states else (),
        "all_transfer_matrices": tuple(),
        "all_mamba_outputs": tuple(),
    }

    vmem_cap = _vmem_capacity()
    x_isz = jnp.dtype(hidden.dtype).itemsize
    w_isz = jnp.dtype(MXU_DTYPE).itemsize
    n_pad, d_pad, tn, tc, tk = _block_plan(n, d, x_isz, w_isz, vmem_cap)

    # Pad once: rows to a multiple of the row tile, d_model to a multiple of
    # 128 so every output block is lane-dense (no masked partial stores).
    x = jnp.pad(hidden, ((0, n_pad - n), (0, d_pad - d)))

    # Keep the whole (bf16, padded) W resident in VMEM when it fits: weight
    # HBM traffic drops from (N_pad/tn) * D_pad^2 to ~D_pad^2 per layer.
    resident_w = (2 * d_pad * d_pad * w_isz <= vmem_cap // 4) and not force_tiled

    # The final LN is fused into the last block's epilogue when that block is
    # full-width and the pre-LN hidden state is not requested.
    fuse_final = resident_w and n_layers > 0 and not return_hidden_states

    for idx, layer in enumerate(params["layers"]):
        is_last = idx == n_layers - 1
        if resident_w:
            fg = params["final_ln_gamma"] if (is_last and fuse_final) else None
            fb = params["final_ln_beta"] if (is_last and fuse_final) else None
            x = _mixer_block_resident(x, layer["ln_gamma"], layer["ln_beta"],
                                      layer["w"], layer["b"],
                                      d_real=d, tn=tn, vmem_cap=vmem_cap,
                                      final_gamma=fg, final_beta=fb)
        else:
            x = _mixer_block_tiled(x, layer["ln_gamma"], layer["ln_beta"],
                                   layer["w"], layer["b"],
                                   d_real=d, tn=tn, tc=tc, tk=tk,
                                   vmem_cap=vmem_cap)
        if return_hidden_states:
            outputs["all_hidden_states"] += (x[:n, :d].reshape(b, s, d),)

    if not fuse_final:
        x = _final_layernorm(x, params["final_ln_gamma"], params["final_ln_beta"],
                             d_real=d, tn=tn, vmem_cap=vmem_cap)

    outputs["last_hidden_state"] = x[:n, :d].reshape(b, s, d)
    return outputs


# ----------------------------------------------------------------------------
# Pure-JAX (f32) reference for a sanity check
# ----------------------------------------------------------------------------
def _ref_forward(params, input_ids):
    hidden = jnp.take(params["embedding"], input_ids.reshape(-1), axis=0).astype(jnp.float32)
    for layer in params["layers"]:
        x = hidden
        mu = jnp.mean(x, -1, keepdims=True)
        var = jnp.mean((x - mu) ** 2, -1, keepdims=True)
        h = (x - mu) * jax.lax.rsqrt(var + NORM_EPS) * layer["ln_gamma"] + layer["ln_beta"]
        hidden = x + h @ layer["w"].astype(jnp.float32) + layer["b"]
    x = hidden
    mu = jnp.mean(x, -1, keepdims=True)
    var = jnp.mean((x - mu) ** 2, -1, keepdims=True)
    y = (x - mu) * jax.lax.rsqrt(var + NORM_EPS) * params["final_ln_gamma"] + params["final_ln_beta"]
    b, s = input_ids.shape
    return y.reshape(b, s, -1)


if __name__ == "__main__":
    # Small deterministic config consistent with the module's forward.
    input_size = 64     # vocab size
    d_model = 32
    n_layer = 2
    batch, seq = 2, 8

    key = jax.random.PRNGKey(0)
    k_params, k_ids = jax.random.split(key)
    params = init_params(k_params, input_size, d_model, n_layer)
    prepped = prepare_params(params)
    input_ids = jax.random.randint(k_ids, (batch, seq), 0, input_size, dtype=jnp.int32)

    ref = _ref_forward(params, input_ids)         # f32 reference (true spec)
    tol = dict(atol=5e-2, rtol=5e-2)              # bf16 MXU feed vs f32 reference

    # Path 1: resident-W blocks, final LN fused into the last block epilogue.
    out = mixer_model_forward(prepped, input_ids, d_model=d_model)
    last = jax.block_until_ready(out["last_hidden_state"])
    assert last.shape == (batch, seq, d_model)
    assert jnp.allclose(last, ref, **tol), "mismatch (resident-W, fused final LN)"

    # Path 2: return_hidden_states=True -> standalone final-LN kernel.
    out2 = mixer_model_forward(prepped, input_ids, d_model=d_model,
                               return_hidden_states=True)
    last2 = jax.block_until_ready(out2["last_hidden_state"])
    assert len(out2["all_hidden_states"]) == n_layer + 1
    assert jnp.allclose(last2, ref, **tol), "mismatch (unfused final LN)"

    # Path 3: force the streamed-weight tiled kernel (the large-d_model path).
    out3 = mixer_model_forward(prepped, input_ids, d_model=d_model,
                               force_tiled=True)
    last3 = jax.block_until_ready(out3["last_hidden_state"])
    assert jnp.allclose(last3, ref, **tol), "mismatch (tiled weight panels)"

    print("KERNEL_OK")
</pallas_src>

<mosaic_0001>
module attributes {stable_mosaic.version = 11 : i64} {
  func.func @kernel(%arg0: i32, %arg1: memref<16x128xf32, #tpu.memory_space<vmem>>, %arg2: memref<1x128xf32, #tpu.memory_space<vmem>>, %arg3: memref<1x128xf32, #tpu.memory_space<vmem>>, %arg4: memref<128x128xbf16, #tpu.memory_space<vmem>>, %arg5: memref<1x128xf32, #tpu.memory_space<vmem>>, %arg6: memref<16x128xf32, #tpu.memory_space<vmem>>) attributes {dimension_semantics = [#tpu.dimension_semantics<parallel>], iteration_bounds = array<i64: 1>, scalar_prefetch = 0 : i64, scratch_operands = 0 : i64, tpu.core_type = #tpu.core_type<tc>, window_params = [{transform_indices = @transform_0, window_bounds = array<i64: 16, 128>}, {pipeline_mode = #tpu.pipeline_mode<synchronous>, transform_indices = @transform_1, window_bounds = array<i64: 1, 128>}, {pipeline_mode = #tpu.pipeline_mode<synchronous>, transform_indices = @transform_2, window_bounds = array<i64: 1, 128>}, {pipeline_mode = #tpu.pipeline_mode<synchronous>, transform_indices = @transform_3, window_bounds = array<i64: 128, 128>}, {pipeline_mode = #tpu.pipeline_mode<synchronous>, transform_indices = @transform_4, window_bounds = array<i64: 1, 128>}, {transform_indices = @transform_5, window_bounds = array<i64: 16, 128>}]} {
    %c0 = arith.constant 0 : index
    %c0_0 = arith.constant 0 : index
    %0 = vector.load %arg1[%c0, %c0_0] : memref<16x128xf32, #tpu.memory_space<vmem>>, vector<16x128xf32>
    %1 = tpu.iota {dimensions = array<i32: 1>} : vector<16x128xi32>
    %c32_i32 = arith.constant 32 : i32
    %2 = vector.broadcast %c32_i32 : i32 to vector<16x128xi32>
    %3 = arith.cmpi slt, %1, %2 : vector<16x128xi32>
    %cst = arith.constant 0.000000e+00 : f32
    %4 = vector.broadcast %cst : f32 to vector<16x128xf32>
    %5 = arith.select %3, %0, %4 : vector<16x128xi1>, vector<16x128xf32>
    %cst_1 = arith.constant dense<0.000000e+00> : vector<16xf32>
    %6 = vector.multi_reduction <add>, %5, %cst_1 [1] : vector<16x128xf32> to vector<16xf32>
    %7 = vector.shape_cast %6 : vector<16xf32> to vector<16x1xf32>
    %cst_2 = arith.constant 3.125000e-02 : f32
    %8 = vector.broadcast %cst_2 : f32 to vector<16x1xf32>
    %9 = arith.mulf %7, %8 : vector<16x1xf32>
    %10 = vector.broadcast %9 : vector<16x1xf32> to vector<16x128xf32>
    %11 = arith.subf %0, %10 : vector<16x128xf32>
    %cst_3 = arith.constant 0.000000e+00 : f32
    %12 = vector.broadcast %cst_3 : f32 to vector<16x128xf32>
    %13 = arith.select %3, %11, %12 : vector<16x128xi1>, vector<16x128xf32>
    %14 = arith.mulf %13, %13 : vector<16x128xf32>
    %cst_4 = arith.constant dense<0.000000e+00> : vector<16xf32>
    %15 = vector.multi_reduction <add>, %14, %cst_4 [1] : vector<16x128xf32> to vector<16xf32>
    %16 = vector.shape_cast %15 : vector<16xf32> to vector<16x1xf32>
    %cst_5 = arith.constant 3.125000e-02 : f32
    %17 = vector.broadcast %cst_5 : f32 to vector<16x1xf32>
    %18 = arith.mulf %16, %17 : vector<16x1xf32>
    %cst_6 = arith.constant 9.99999974E-6 : f32
    %19 = vector.broadcast %cst_6 : f32 to vector<16x1xf32>
    %20 = arith.addf %18, %19 : vector<16x1xf32>
    %21 = math.rsqrt %20 : vector<16x1xf32>
    %22 = vector.broadcast %21 : vector<16x1xf32> to vector<16x128xf32>
    %23 = arith.mulf %13, %22 : vector<16x128xf32>
    %c0_7 = arith.constant 0 : index
    %c0_8 = arith.constant 0 : index
    %24 = vector.load %arg2[%c0_7, %c0_8] : memref<1x128xf32, #tpu.memory_space<vmem>>, vector<1x128xf32>
    %25 = vector.broadcast %24 : vector<1x128xf32> to vector<16x128xf32>
    %26 = arith.mulf %23, %25 : vector<16x128xf32>
    %c0_9 = arith.constant 0 : index
    %c0_10 = arith.constant 0 : index
    %27 = vector.load %arg3[%c0_9, %c0_10] : memref<1x128xf32, #tpu.memory_space<vmem>>, vector<1x128xf32>
    %28 = vector.broadcast %27 : vector<1x128xf32> to vector<16x128xf32>
    %29 = arith.addf %26, %28 : vector<16x128xf32>
    %30 = arith.truncf %29 : vector<16x128xf32> to vector<16x128xbf16>
    %c0_11 = arith.constant 0 : index
    %c0_12 = arith.constant 0 : index
    %31 = vector.load %arg4[%c0_11, %c0_12] : memref<128x128xbf16, #tpu.memory_space<vmem>>, vector<128x128xbf16>
    %cst_13 = arith.constant dense<0.000000e+00> : vector<16x128xf32>
    %32 = tpu.matmul %30, %31, %cst_13 {dimension_numbers = #tpu.dot_dimension_numbers<[1], [0], [0], [1], [0, 0, 1, 1], [], []>} : vector<16x128xbf16>, vector<128x128xbf16>, vector<16x128xf32> -> vector<16x128xf32>
    %33 = arith.addf %32, %0 : vector<16x128xf32>
    %c0_14 = arith.constant 0 : index
    %c0_15 = arith.constant 0 : index
    %34 = vector.load %arg5[%c0_14, %c0_15] : memref<1x128xf32, #tpu.memory_space<vmem>>, vector<1x128xf32>
    %35 = vector.broadcast %34 : vector<1x128xf32> to vector<16x128xf32>
    %36 = arith.addf %33, %35 : vector<16x128xf32>
    %c0_16 = arith.constant 0 : index
    %c0_17 = arith.constant 0 : index
    %37 = vector.load %arg6[%c0_16, %c0_17] : memref<16x128xf32, #tpu.memory_space<vmem>>, vector<16x128xf32>
    tpu.vector_store %arg6[%c0_16, %c0_17], %36 {strides = array<i32>} : memref<16x128xf32, #tpu.memory_space<vmem>>, vector<16x128xf32>,
    return
  }
  func.func @transform_0(%arg0: i32) -> (i32, i32) {
    %c0_i32 = arith.constant 0 : i32
    %c0_i32_0 = arith.constant 0 : i32
    return %arg0, %c0_i32 : i32, i32
  }
  func.func @transform_1(%arg0: i32) -> (i32, i32) {
    %c0_i32 = arith.constant 0 : i32
    %c0_i32_0 = arith.constant 0 : i32
    %c0_i32_1 = arith.constant 0 : i32
    return %c0_i32, %c0_i32_0 : i32, i32
  }
  func.func @transform_2(%arg0: i32) -> (i32, i32) {
    %c0_i32 = arith.constant 0 : i32
    %c0_i32_0 = arith.constant 0 : i32
    %c0_i32_1 = arith.constant 0 : i32
    return %c0_i32, %c0_i32_0 : i32, i32
  }
  func.func @transform_3(%arg0: i32) -> (i32, i32) {
    %c0_i32 = arith.constant 0 : i32
    %c0_i32_0 = arith.constant 0 : i32
    %c0_i32_1 = arith.constant 0 : i32
    return %c0_i32, %c0_i32_0 : i32, i32
  }
  func.func @transform_4(%arg0: i32) -> (i32, i32) {
    %c0_i32 = arith.constant 0 : i32
    %c0_i32_0 = arith.constant 0 : i32
    %c0_i32_1 = arith.constant 0 : i32
    return %c0_i32, %c0_i32_0 : i32, i32
  }
  func.func @transform_5(%arg0: i32) -> (i32, i32) {
    %c0_i32 = arith.constant 0 : i32
    %c0_i32_0 = arith.constant 0 : i32
    return %arg0, %c0_i32 : i32, i32
  }
}

module attributes {stable_mosaic.version = 11 : i64} {
  func.func @kernel(%arg0: i32, %arg1: memref<16x128xf32, #tpu.memory_space<vmem>>, %arg2: memref<1x128xf32, #tpu.memory_space<vmem>>, %arg3: memref<1x128xf32, #tpu.memory_space<vmem>>, %arg4: memref<128x128xbf16, #tpu.memory_space<vmem>>, %arg5: memref<1x128xf32, #tpu.memory_space<vmem>>, %arg6: memref<1x128xf32, #tpu.memory_space<vmem>>, %arg7: memref<1x128xf32, #tpu.memory_space<vmem>>, %arg8: memref<16x128xf32, #tpu.memory_space<vmem>>) attributes {dimension_semantics = [#tpu.dimension_semantics<parallel>], iteration_bounds = array<i64: 1>, scalar_prefetch = 0 : i64, scratch_operands = 0 : i64, tpu.core_type = #tpu.core_type<tc>, window_params = [{transform_indices = @transform_0, window_bounds = array<i64: 16, 128>}, {pipeline_mode = #tpu.pipeline_mode<synchronous>, transform_indices = @transform_1, window_bounds = array<i64: 1, 128>}, {pipeline_mode = #tpu.pipeline_mode<synchronous>, transform_indices = @transform_2, window_bounds = array<i64: 1, 128>}, {pipeline_mode = #tpu.pipeline_mode<synchronous>, transform_indices = @transform_3, window_bounds = array<i64: 128, 128>}, {pipeline_mode = #tpu.pipeline_mode<synchronous>, transform_indices = @transform_4, window_bounds = array<i64: 1, 128>}, {pipeline_mode = #tpu.pipeline_mode<synchronous>, transform_indices = @transform_5, window_bounds = array<i64: 1, 128>}, {pipeline_mode = #tpu.pipeline_mode<synchronous>, transform_indices = @transform_6, window_bounds = array<i64: 1, 128>}, {transform_indices = @transform_7, window_bounds = array<i64: 16, 128>}]} {
    %c0 = arith.constant 0 : index
    %c0_0 = arith.constant 0 : index
    %0 = vector.load %arg1[%c0, %c0_0] : memref<16x128xf32, #tpu.memory_space<vmem>>, vector<16x128xf32>
    %1 = tpu.iota {dimensions = array<i32: 1>} : vector<16x128xi32>
    %c32_i32 = arith.constant 32 : i32
    %2 = vector.broadcast %c32_i32 : i32 to vector<16x128xi32>
    %3 = arith.cmpi slt, %1, %2 : vector<16x128xi32>
    %cst = arith.constant 0.000000e+00 : f32
    %4 = vector.broadcast %cst : f32 to vector<16x128xf32>
    %5 = arith.select %3, %0, %4 : vector<16x128xi1>, vector<16x128xf32>
    %cst_1 = arith.constant dense<0.000000e+00> : vector<16xf32>
    %6 = vector.multi_reduction <add>, %5, %cst_1 [1] : vector<16x128xf32> to vector<16xf32>
    %7 = vector.shape_cast %6 : vector<16xf32> to vector<16x1xf32>
    %cst_2 = arith.constant 3.125000e-02 : f32
    %8 = vector.broadcast %cst_2 : f32 to vector<16x1xf32>
    %9 = arith.mulf %7, %8 : vector<16x1xf32>
    %10 = vector.broadcast %9 : vector<16x1xf32> to vector<16x128xf32>
    %11 = arith.subf %0, %10 : vector<16x128xf32>
    %cst_3 = arith.constant 0.000000e+00 : f32
    %12 = vector.broadcast %cst_3 : f32 to vector<16x128xf32>
    %13 = arith.select %3, %11, %12 : vector<16x128xi1>, vector<16x128xf32>
    %14 = arith.mulf %13, %13 : vector<16x128xf32>
    %cst_4 = arith.constant dense<0.000000e+00> : vector<16xf32>
    %15 = vector.multi_reduction <add>, %14, %cst_4 [1] : vector<16x128xf32> to vector<16xf32>
    %16 = vector.shape_cast %15 : vector<16xf32> to vector<16x1xf32>
    %cst_5 = arith.constant 3.125000e-02 : f32
    %17 = vector.broadcast %cst_5 : f32 to vector<16x1xf32>
    %18 = arith.mulf %16, %17 : vector<16x1xf32>
    %cst_6 = arith.constant 9.99999974E-6 : f32
    %19 = vector.broadcast %cst_6 : f32 to vector<16x1xf32>
    %20 = arith.addf %18, %19 : vector<16x1xf32>
    %21 = math.rsqrt %20 : vector<16x1xf32>
    %22 = vector.broadcast %21 : vector<16x1xf32> to vector<16x128xf32>
    %23 = arith.mulf %13, %22 : vector<16x128xf32>
    %c0_7 = arith.constant 0 : index
    %c0_8 = arith.constant 0 : index
    %24 = vector.load %arg2[%c0_7, %c0_8] : memref<1x128xf32, #tpu.memory_space<vmem>>, vector<1x128xf32>
    %25 = vector.broadcast %24 : vector<1x128xf32> to vector<16x128xf32>
    %26 = arith.mulf %23, %25 : vector<16x128xf32>
    %c0_9 = arith.constant 0 : index
    %c0_10 = arith.constant 0 : index
    %27 = vector.load %arg3[%c0_9, %c0_10] : memref<1x128xf32, #tpu.memory_space<vmem>>, vector<1x128xf32>
    %28 = vector.broadcast %27 : vector<1x128xf32> to vector<16x128xf32>
    %29 = arith.addf %26, %28 : vector<16x128xf32>
    %30 = arith.truncf %29 : vector<16x128xf32> to vector<16x128xbf16>
    %c0_11 = arith.constant 0 : index
    %c0_12 = arith.constant 0 : index
    %31 = vector.load %arg4[%c0_11, %c0_12] : memref<128x128xbf16, #tpu.memory_space<vmem>>, vector<128x128xbf16>
    %cst_13 = arith.constant dense<0.000000e+00> : vector<16x128xf32>
    %32 = tpu.matmul %30, %31, %cst_13 {dimension_numbers = #tpu.dot_dimension_numbers<[1], [0], [0], [1], [0, 0, 1, 1], [], []>} : vector<16x128xbf16>, vector<128x128xbf16>, vector<16x128xf32> -> vector<16x128xf32>
    %33 = arith.addf %32, %0 : vector<16x128xf32>
    %c0_14 = arith.constant 0 : index
    %c0_15 = arith.constant 0 : index
    %34 = vector.load %arg5[%c0_14, %c0_15] : memref<1x128xf32, #tpu.memory_space<vmem>>, vector<1x128xf32>
    %35 = vector.broadcast %34 : vector<1x128xf32> to vector<16x128xf32>
    %36 = arith.addf %33, %35 : vector<16x128xf32>
    %37 = tpu.iota {dimensions = array<i32: 1>} : vector<16x128xi32>
    %c32_i32_16 = arith.constant 32 : i32
    %38 = vector.broadcast %c32_i32_16 : i32 to vector<16x128xi32>
    %39 = arith.cmpi slt, %37, %38 : vector<16x128xi32>
    %cst_17 = arith.constant 0.000000e+00 : f32
    %40 = vector.broadcast %cst_17 : f32 to vector<16x128xf32>
    %41 = arith.select %39, %36, %40 : vector<16x128xi1>, vector<16x128xf32>
    %cst_18 = arith.constant dense<0.000000e+00> : vector<16xf32>
    %42 = vector.multi_reduction <add>, %41, %cst_18 [1] : vector<16x128xf32> to vector<16xf32>
    %43 = vector.shape_cast %42 : vector<16xf32> to vector<16x1xf32>
    %cst_19 = arith.constant 3.125000e-02 : f32
    %44 = vector.broadcast %cst_19 : f32 to vector<16x1xf32>
    %45 = arith.mulf %43, %44 : vector<16x1xf32>
    %46 = vector.broadcast %45 : vector<16x1xf32> to vector<16x128xf32>
    %47 = arith.subf %36, %46 : vector<16x128xf32>
    %cst_20 = arith.constant 0.000000e+00 : f32
    %48 = vector.broadcast %cst_20 : f32 to vector<16x128xf32>
    %49 = arith.select %39, %47, %48 : vector<16x128xi1>, vector<16x128xf32>
    %50 = arith.mulf %49, %49 : vector<16x128xf32>
    %cst_21 = arith.constant dense<0.000000e+00> : vector<16xf32>
    %51 = vector.multi_reduction <add>, %50, %cst_21 [1] : vector<16x128xf32> to vector<16xf32>
    %52 = vector.shape_cast %51 : vector<16xf32> to vector<16x1xf32>
    %cst_22 = arith.constant 3.125000e-02 : f32
    %53 = vector.broadcast %cst_22 : f32 to vector<16x1xf32>
    %54 = arith.mulf %52, %53 : vector<16x1xf32>
    %cst_23 = arith.constant 9.99999974E-6 : f32
    %55 = vector.broadcast %cst_23 : f32 to vector<16x1xf32>
    %56 = arith.addf %54, %55 : vector<16x1xf32>
    %57 = math.rsqrt %56 : vector<16x1xf32>
    %58 = vector.broadcast %57 : vector<16x1xf32> to vector<16x128xf32>
    %59 = arith.mulf %49, %58 : vector<16x128xf32>
    %c0_24 = arith.constant 0 : index
    %c0_25 = arith.constant 0 : index
    %60 = vector.load %arg6[%c0_24, %c0_25] : memref<1x128xf32, #tpu.memory_space<vmem>>, vector<1x128xf32>
    %61 = vector.broadcast %60 : vector<1x128xf32> to vector<16x128xf32>
    %62 = arith.mulf %59, %61 : vector<16x128xf32>
    %c0_26 = arith.constant 0 : index
    %c0_27 = arith.constant 0 : index
    %63 = vector.load %arg7[%c0_26, %c0_27] : memref<1x128xf32, #tpu.memory_space<vmem>>, vector<1x128xf32>
    %64 = vector.broadcast %63 : vector<1x128xf32> to vector<16x128xf32>
    %65 = arith.addf %62, %64 : vector<16x128xf32>
    %c0_28 = arith.constant 0 : index
    %c0_29 = arith.constant 0 : index
    %66 = vector.load %arg8[%c0_28, %c0_29] : memref<16x128xf32, #tpu.memory_space<vmem>>, vector<16x128xf32>
    tpu.vector_store %arg8[%c0_28, %c0_29], %65 {strides = array<i32>} : memref<16x128xf32, #tpu.memory_space<vmem>>, vector<16x128xf32>,
    return
  }
  func.func @transform_0(%arg0: i32) -> (i32, i32) {
    %c0_i32 = arith.constant 0 : i32
    %c0_i32_0 = arith.constant 0 : i32
    return %arg0, %c0_i32 : i32, i32
  }
  func.func @transform_1(%arg0: i32) -> (i32, i32) {
    %c0_i32 = arith.constant 0 : i32
    %c0_i32_0 = arith.constant 0 : i32
    %c0_i32_1 = arith.constant 0 : i32
    return %c0_i32, %c0_i32_0 : i32, i32
  }
  func.func @transform_2(%arg0: i32) -> (i32, i32) {
    %c0_i32 = arith.constant 0 : i32
    %c0_i32_0 = arith.constant 0 : i32
    %c0_i32_1 = arith.constant 0 : i32
    return %c0_i32, %c0_i32_0 : i32, i32
  }
  func.func @transform_3(%arg0: i32) -> (i32, i32) {
    %c0_i32 = arith.constant 0 : i32
    %c0_i32_0 = arith.constant 0 : i32
    %c0_i32_1 = arith.constant 0 : i32
    return %c0_i32, %c0_i32_0 : i32, i32
  }
  func.func @transform_4(%arg0: i32) -> (i32, i32) {
    %c0_i32 = arith.constant 0 : i32
    %c0_i32_0 = arith.constant 0 : i32
    %c0_i32_1 = arith.constant 0 : i32
    return %c0_i32, %c0_i32_0 : i32, i32
  }
  func.func @transform_5(%arg0: i32) -> (i32, i32) {
    %c0_i32 = arith.constant 0 : i32
    %c0_i32_0 = arith.constant 0 : i32
    %c0_i32_1 = arith.constant 0 : i32
    return %c0_i32, %c0_i32_0 : i32, i32
  }
  func.func @transform_6(%arg0: i32) -> (i32, i32) {
    %c0_i32 = arith.constant 0 : i32
    %c0_i32_0 = arith.constant 0 : i32
    %c0_i32_1 = arith.constant 0 : i32
    return %c0_i32, %c0_i32_0 : i32, i32
  }
  func.func @transform_7(%arg0: i32) -> (i32, i32) {
    %c0_i32 = arith.constant 0 : i32
    %c0_i32_0 = arith.constant 0 : i32
    return %arg0, %c0_i32 : i32, i32
  }
}

</mosaic_0001>

<llo_original>
// kernel: mixer_model_forward.3
$region0: #{mixer_model_forward.3}
  #allocation0 [shape = 'u32[]', space=smem, size = 0x4, offset = 0x4, fixed_abs, tag = 'smem constant byte address 0x4 - core index']
  #allocation1 [shape = 'u32[72,128]{1,0:T(1,128)}', space=vmem, size = 0x9000, scoped, tag = 'internal scratch']
  %s0 = inlined_call_operand.vmem [shape: f32[16,128], index: 0, kind: input, shape index: {}, may-alias: {0,7}]
  %s1 = inlined_call_operand.vmem [shape: f32[1,128], index: 1, kind: input, shape index: {}]
  %s2 = inlined_call_operand.vmem [shape: f32[1,128], index: 2, kind: input, shape index: {}]
  %s3 = inlined_call_operand.vmem [shape: bf16[128,128], index: 3, kind: input, shape index: {}]
  %s4 = inlined_call_operand.vmem [shape: f32[1,128], index: 4, kind: input, shape index: {}]
  %s5 = inlined_call_operand.vmem [shape: f32[1,128], index: 5, kind: input, shape index: {}]
  %s6 = inlined_call_operand.vmem [shape: f32[1,128], index: 6, kind: input, shape index: {}]
  %s7 = inlined_call_operand.vmem [shape: f32[16,128], index: 7, kind: output, shape index: {}, may-alias: {0,7}]
  %s8 = sld [smem:[#allocation0]]
  $region38: #{mixer_model_forward.3} parent=0
    _
  %s10 = ssub.s32 1, %s8
  %s11 = scalar_select 0, %s10, %s8
  // Predicated region
  $region2: #{mixer_model_forward.3} parent=0 // pred_check
    _
  $region3: #{mixer_model_forward.3} parent=0 // pred_check_branch
    %13 = sbr.rel (0) target = $region5
  $region4: #{mixer_model_forward.3} parent=0 // pred_region
    _
  $region5: #{mixer_model_forward.3} parent=0 // pred_fallthru
    _
  // Predicated region
  $region6: #{mixer_model_forward.3} parent=0 // pred_check
    _
  $region7: #{mixer_model_forward.3} parent=0 // pred_check_branch
    %15 = sbr.rel (0) target = $region9
  $region8: #{mixer_model_forward.3} parent=0 // pred_region
    _
  $region9: #{mixer_model_forward.3} parent=0 // pred_fallthru
    _
  // Predicated region
  $region10: #{mixer_model_forward.3} parent=0 // pred_check
    _
  $region11: #{mixer_model_forward.3} parent=0 // pred_check_branch
    %17 = sbr.rel (0) target = $region13
  $region12: #{mixer_model_forward.3} parent=0 // pred_region
    _
  $region13: #{mixer_model_forward.3} parent=0 // pred_fallthru
    _
  // Predicated region
  $region14: #{mixer_model_forward.3} parent=0 // pred_check
    _
  $region15: #{mixer_model_forward.3} parent=0 // pred_check_branch
    %19 = sbr.rel (0) target = $region17
  $region16: #{mixer_model_forward.3} parent=0 // pred_region
    _
  $region17: #{mixer_model_forward.3} parent=0 // pred_fallthru
    _
  // Predicated region
  $region18: #{mixer_model_forward.3} parent=0 // pred_check
    _
  $region19: #{mixer_model_forward.3} parent=0 // pred_check_branch
    %21 = sbr.rel (0) target = $region21
  $region20: #{mixer_model_forward.3} parent=0 // pred_region
    _
  $region21: #{mixer_model_forward.3} parent=0 // pred_fallthru
    _
  // Predicated region
  $region22: #{mixer_model_forward.3} parent=0 // pred_check
    _
  $region23: #{mixer_model_forward.3} parent=0 // pred_check_branch
    %23 = sbr.rel (0) target = $region25
  $region24: #{mixer_model_forward.3} parent=0 // pred_region
    _
  $region25: #{mixer_model_forward.3} parent=0 // pred_fallthru
    _
  // Predicated region
  $region26: #{mixer_model_forward.3} parent=0 // pred_check
    _
  $region27: #{mixer_model_forward.3} parent=0 // pred_check_branch
    %25 = sbr.rel (0) target = $region29
  $region28: #{mixer_model_forward.3} parent=0 // pred_region
    _
  $region29: #{mixer_model_forward.3} parent=0 // pred_fallthru
    _
  %v26 = vld [vmem:[%s0] sm:$0xff]
  %v27 = vld [vmem:[%s0 + $0x8] sm:$0xff]
  %v28 = vlaneseq
  %v29 = vand.u32 %v28, 127
  %vm30 = vcmp.lt.s32.totalorder %v29, 32
  %v31 = vsel %vm30, %v26, 0.0
  %v32 = vsel %vm30, %v27, 0.0
  %33 = vadd.xlane.f32.xlu0 %v31
  %v34 = vpop.xlane.xlu0 %33
  %35 = vadd.xlane.f32.xlu0 %v32
  %v36 = vpop.xlane.xlu0 %35
  %v37 = vmul.f32 %v34, 0.03125
  %v38 = vmul.f32 %v36, 0.03125
  %v39 = vsub.f32 %v26, %v37
  %v40 = vsub.f32 %v27, %v38
  %v41 = vsel %vm30, %v39, 0.0
  %v42 = vsel %vm30, %v40, 0.0
  %v43 = vmul.f32 %v41, %v41
  %v44 = vmul.f32 %v42, %v42
  %45 = vadd.xlane.f32.xlu0 %v43
  %v46 = vpop.xlane.xlu0 %45
  %47 = vadd.xlane.f32.xlu0 %v44
  %v48 = vpop.xlane.xlu0 %47
  %v49 = vmul.f32 %v46, 0.03125
  %v50 = vmul.f32 %v48, 0.03125
  %v51 = vadd.f32 %v49, 1e-05
  %v52 = vadd.f32 %v50, 1e-05
  %v53 = vrsqrt.pop %v51
  %v54 = vmul.f32 %v53, %v51
  %v55 = vmul.f32 %v54, %v53
  %v56 = vmul.f32 0.5, %v55
  %v57 = vsub.f32 1.5, %v56
  %v58 = vmul.f32 %v53, %v57
  %vm59 = vweird.f32 %v51
  %vm60 = vweird.f32 %v53
  %vm61 = vmor %vm59, %vm60
  %v62 = vsel %vm61, %v53, %v58
  %v63 = vrsqrt.pop %v52
  %v64 = vmul.f32 %v63, %v52
  %v65 = vmul.f32 %v64, %v63
  %v66 = vmul.f32 0.5, %v65
  %v67 = vsub.f32 1.5, %v66
  %v68 = vmul.f32 %v63, %v67
  %vm69 = vweird.f32 %v52
  %vm70 = vweird.f32 %v63
  %vm71 = vmor %vm69, %vm70
  %v72 = vsel %vm71, %v63, %v68
  %v73 = vmul.f32 %v41, %v62
  %v74 = vmul.f32 %v42, %v72
  %v75 = vld [vmem:[%s1] sm:$0x1]
  %v77 = vperm.slane %v75, 0
  %v79 = vmul.f32 %v73, %v77
  %v80 = vmul.f32 %v74, %v77
  %v81 = vld [vmem:[%s2] sm:$0x1]
  %v83 = vperm.slane %v81, 0
  %v85 = vadd.f32 %v79, %v83
  %v86 = vadd.f32 %v80, %v83
  %v87 = vpack.c.bf16 %v86, %v85
  %v88 = vld [vmem:[%s3] sm:$0xf]
  %v89 = vld [vmem:[%s3 + $0x4] sm:$0xf]
  %v90 = vld [vmem:[%s3 + $0x8] sm:$0xf]
  %v91 = vld [vmem:[%s3 + $0xc] sm:$0xf]
  %v92 = vld [vmem:[%s3 + $0x10] sm:$0xf]
  %v93 = vld [vmem:[%s3 + $0x14] sm:$0xf]
  %v94 = vld [vmem:[%s3 + $0x18] sm:$0xf]
  %v95 = vld [vmem:[%s3 + $0x1c] sm:$0xf]
  %v96 = vld [vmem:[%s3 + $0x20] sm:$0xf]
  %v97 = vld [vmem:[%s3 + $0x24] sm:$0xf]
  %v98 = vld [vmem:[%s3 + $0x28] sm:$0xf]
  %v99 = vld [vmem:[%s3 + $0x2c] sm:$0xf]
  %v100 = vld [vmem:[%s3 + $0x30] sm:$0xf]
  %v101 = vld [vmem:[%s3 + $0x34] sm:$0xf]
  %v102 = vld [vmem:[%s3 + $0x38] sm:$0xf]
  %v103 = vld [vmem:[%s3 + $0x3c] sm:$0xf]
  %v120 = vunpack.c.l.b16 %v88
  %v121 = vunpack.c.l.b16 %v89
  %v122 = vunpack.c.l.b16 %v90
  %v123 = vunpack.c.l.b16 %v91
  %v124 = vunpack.c.l.b16 %v92
  %v125 = vunpack.c.l.b16 %v93
  %v126 = vunpack.c.l.b16 %v94
  %v127 = vunpack.c.l.b16 %v95
  %v128 = vunpack.c.l.b16 %v96
  %v129 = vunpack.c.l.b16 %v97
  %v130 = vunpack.c.l.b16 %v98
  %v131 = vunpack.c.l.b16 %v99
  %v132 = vunpack.c.l.b16 %v100
  %v133 = vunpack.c.l.b16 %v101
  %v134 = vunpack.c.l.b16 %v102
  %v135 = vunpack.c.l.b16 %v103
  %v136 = vpack.c.b16 %v121, %v120
  %v137 = vpack.c.b16 %v123, %v122
  %v138 = vpack.c.b16 %v125, %v124
  %v139 = vpack.c.b16 %v127, %v126
  %v140 = vpack.c.b16 %v129, %v128
  %v141 = vpack.c.b16 %v131, %v130
  %v142 = vpack.c.b16 %v133, %v132
  %v143 = vpack.c.b16 %v135, %v134
  %152 = vmatpush.bf16.msra.mxu0 %v143
  %153 = vmatpush.bf16.msra.mxu0 %v142
  %154 = vmatpush.bf16.msra.mxu0 %v141
  %155 = vmatpush.bf16.msra.mxu0 %v140
  %156 = vmatpush.bf16.msra.mxu0 %v139
  %157 = vmatpush.bf16.msra.mxu0 %v138
  %158 = vmatpush.bf16.msra.mxu0 %v137
  %159 = vmatpush.bf16.msra.mxu0 %v136
  %160 = vmatmul.bf16.gmra.mxu0 %v87
  %v161 = vpop.f32.mrf.mxu0
  %v162 = vadd.f32 %v26, %v161
  %v163 = vpop.f32.mrf.mxu0
  %v164 = vadd.f32 %v27, %v163
  %165 = vdwg.mxu0
  %v166 = vld [vmem:[%s4] sm:$0x1]
  %v168 = vperm.slane %v166, 0
  %v170 = vadd.f32 %v162, %v168
  %v171 = vadd.f32 %v164, %v168
  %v172 = vsel %vm30, %v170, 0.0
  %v173 = vsel %vm30, %v171, 0.0
  %174 = vadd.xlane.f32.xlu0 %v172
  %v175 = vpop.xlane.xlu0 %174
  %176 = vadd.xlane.f32.xlu0 %v173
  %v177 = vpop.xlane.xlu0 %176
  %v178 = vmul.f32 %v175, 0.03125
  %v179 = vmul.f32 %v177, 0.03125
  %v180 = vsub.f32 %v170, %v178
  %v181 = vsub.f32 %v171, %v179
  %v182 = vsel %vm30, %v180, 0.0
  %v183 = vsel %vm30, %v181, 0.0
  %v184 = vmul.f32 %v182, %v182
  %v185 = vmul.f32 %v183, %v183
  %186 = vadd.xlane.f32.xlu0 %v184
  %v187 = vpop.xlane.xlu0 %186
  %188 = vadd.xlane.f32.xlu0 %v185
  %v189 = vpop.xlane.xlu0 %188
  %v190 = vmul.f32 %v187, 0.03125
  %v191 = vmul.f32 %v189, 0.03125
  %v192 = vadd.f32 %v190, 1e-05
  %v193 = vadd.f32 %v191, 1e-05
  %v194 = vrsqrt.pop %v192
  %v195 = vmul.f32 %v194, %v192
  %v196 = vmul.f32 %v195, %v194
  %v197 = vmul.f32 0.5, %v196
  %v198 = vsub.f32 1.5, %v197
  %v199 = vmul.f32 %v194, %v198
  %vm200 = vweird.f32 %v192
  %vm201 = vweird.f32 %v194
  %vm202 = vmor %vm200, %vm201
  %v203 = vsel %vm202, %v194, %v199
  %v204 = vrsqrt.pop %v193
  %v205 = vmul.f32 %v204, %v193
  %v206 = vmul.f32 %v205, %v204
  %v207 = vmul.f32 0.5, %v206
  %v208 = vsub.f32 1.5, %v207
  %v209 = vmul.f32 %v204, %v208
  %vm210 = vweird.f32 %v193
  %vm211 = vweird.f32 %v204
  %vm212 = vmor %vm210, %vm211
  %v213 = vsel %vm212, %v204, %v209
  %v214 = vmul.f32 %v182, %v203
  %v215 = vmul.f32 %v183, %v213
  %v216 = vld [vmem:[%s5] sm:$0x1]
  %v218 = vperm.slane %v216, 0
  %v220 = vmul.f32 %v214, %v218
  %v221 = vmul.f32 %v215, %v218
  %v222 = vld [vmem:[%s6] sm:$0x1]
  %v224 = vperm.slane %v222, 0
  %v226 = vadd.f32 %v220, %v224
  %v227 = vadd.f32 %v221, %v224
  %228 = vst [vmem:[%s7] sm:$0xff] %v226
  %229 = vst [vmem:[%s7 + $0x8] sm:$0xff] %v227
  // Predicated region
  $region30: #{mixer_model_forward.3} parent=0 // pred_check
    _
  $region31: #{mixer_model_forward.3} parent=0 // pred_check_branch
    %231 = sbr.rel (0) target = $region33
  $region32: #{mixer_model_forward.3} parent=0 // pred_region
    _
  $region33: #{mixer_model_forward.3} parent=0 // pred_fallthru
    _
  // Predicated region
  $region34: #{mixer_model_forward.3} parent=0 // pred_check
    _
  $region35: #{mixer_model_forward.3} parent=0 // pred_check_branch
    %233 = sbr.rel (0) target = $region37
  $region36: #{mixer_model_forward.3} parent=0 // pred_region
    _
  $region37: #{mixer_model_forward.3} parent=0 // pred_fallthru
    _

// kernel: mixer_model_forward.2
$region0: #{mixer_model_forward.2}
  #allocation0 [shape = 'u32[]', space=smem, size = 0x4, offset = 0x4, fixed_abs, tag = 'smem constant byte address 0x4 - core index']
  #allocation1 [shape = 'u32[72,128]{1,0:T(1,128)}', space=vmem, size = 0x9000, scoped, tag = 'internal scratch']
  %s0 = inlined_call_operand.vmem [shape: f32[16,128], index: 0, kind: input, shape index: {}, may-alias: {0,5}]
  %s1 = inlined_call_operand.vmem [shape: f32[1,128], index: 1, kind: input, shape index: {}]
  %s2 = inlined_call_operand.vmem [shape: f32[1,128], index: 2, kind: input, shape index: {}]
  %s3 = inlined_call_operand.vmem [shape: bf16[128,128], index: 3, kind: input, shape index: {}]
  %s4 = inlined_call_operand.vmem [shape: f32[1,128], index: 4, kind: input, shape index: {}]
  %s5 = inlined_call_operand.vmem [shape: f32[16,128], index: 5, kind: output, shape index: {}, may-alias: {0,5}]
  %s6 = sld [smem:[#allocation0]]
  $region30: #{mixer_model_forward.2} parent=0
    _
  %s8 = ssub.s32 1, %s6
  %s9 = scalar_select 0, %s8, %s6
  // Predicated region
  $region2: #{mixer_model_forward.2} parent=0 // pred_check
    _
  $region3: #{mixer_model_forward.2} parent=0 // pred_check_branch
    %11 = sbr.rel (0) target = $region5
  $region4: #{mixer_model_forward.2} parent=0 // pred_region
    _
  $region5: #{mixer_model_forward.2} parent=0 // pred_fallthru
    _
  // Predicated region
  $region6: #{mixer_model_forward.2} parent=0 // pred_check
    _
  $region7: #{mixer_model_forward.2} parent=0 // pred_check_branch
    %13 = sbr.rel (0) target = $region9
  $region8: #{mixer_model_forward.2} parent=0 // pred_region
    _
  $region9: #{mixer_model_forward.2} parent=0 // pred_fallthru
    _
  // Predicated region
  $region10: #{mixer_model_forward.2} parent=0 // pred_check
    _
  $region11: #{mixer_model_forward.2} parent=0 // pred_check_branch
    %15 = sbr.rel (0) target = $region13
  $region12: #{mixer_model_forward.2} parent=0 // pred_region
    _
  $region13: #{mixer_model_forward.2} parent=0 // pred_fallthru
    _
  // Predicated region
  $region14: #{mixer_model_forward.2} parent=0 // pred_check
    _
  $region15: #{mixer_model_forward.2} parent=0 // pred_check_branch
    %17 = sbr.rel (0) target = $region17
  $region16: #{mixer_model_forward.2} parent=0 // pred_region
    _
  $region17: #{mixer_model_forward.2} parent=0 // pred_fallthru
    _
  // Predicated region
  $region18: #{mixer_model_forward.2} parent=0 // pred_check
    _
  $region19: #{mixer_model_forward.2} parent=0 // pred_check_branch
    %19 = sbr.rel (0) target = $region21
  $region20: #{mixer_model_forward.2} parent=0 // pred_region
    _
  $region21: #{mixer_model_forward.2} parent=0 // pred_fallthru
    _
  %v20 = vld [vmem:[%s0] sm:$0xff]
  %v21 = vld [vmem:[%s0 + $0x8] sm:$0xff]
  %v22 = vlaneseq
  %v23 = vand.u32 %v22, 127
  %vm24 = vcmp.lt.s32.totalorder %v23, 32
  %v25 = vsel %vm24, %v20, 0.0
  %v26 = vsel %vm24, %v21, 0.0
  %27 = vadd.xlane.f32.xlu0 %v25
  %v28 = vpop.xlane.xlu0 %27
  %29 = vadd.xlane.f32.xlu0 %v26
  %v30 = vpop.xlane.xlu0 %29
  %v31 = vmul.f32 %v28, 0.03125
  %v32 = vmul.f32 %v30, 0.03125
  %v33 = vsub.f32 %v20, %v31
  %v34 = vsub.f32 %v21, %v32
  %v35 = vsel %vm24, %v33, 0.0
  %v36 = vsel %vm24, %v34, 0.0
  %v37 = vmul.f32 %v35, %v35
  %v38 = vmul.f32 %v36, %v36
  %39 = vadd.xlane.f32.xlu0 %v37
  %v40 = vpop.xlane.xlu0 %39
  %41 = vadd.xlane.f32.xlu0 %v38
  %v42 = vpop.xlane.xlu0 %41
  %v43 = vmul.f32 %v40, 0.03125
  %v44 = vmul.f32 %v42, 0.03125
  %v45 = vadd.f32 %v43, 1e-05
  %v46 = vadd.f32 %v44, 1e-05
  %v47 = vrsqrt.pop %v45
  %v48 = vmul.f32 %v47, %v45
  %v49 = vmul.f32 %v48, %v47
  %v50 = vmul.f32 0.5, %v49
  %v51 = vsub.f32 1.5, %v50
  %v52 = vmul.f32 %v47, %v51
  %vm53 = vweird.f32 %v45
  %vm54 = vweird.f32 %v47
  %vm55 = vmor %vm53, %vm54
  %v56 = vsel %vm55, %v47, %v52
  %v57 = vrsqrt.pop %v46
  %v58 = vmul.f32 %v57, %v46
  %v59 = vmul.f32 %v58, %v57
  %v60 = vmul.f32 0.5, %v59
  %v61 = vsub.f32 1.5, %v60
  %v62 = vmul.f32 %v57, %v61
  %vm63 = vweird.f32 %v46
  %vm64 = vweird.f32 %v57
  %vm65 = vmor %vm63, %vm64
  %v66 = vsel %vm65, %v57, %v62
  %v67 = vmul.f32 %v35, %v56
  %v68 = vmul.f32 %v36, %v66
  %v69 = vld [vmem:[%s1] sm:$0x1]
  %v71 = vperm.slane %v69, 0
  %v73 = vmul.f32 %v67, %v71
  %v74 = vmul.f32 %v68, %v71
  %v75 = vld [vmem:[%s2] sm:$0x1]
  %v77 = vperm.slane %v75, 0
  %v79 = vadd.f32 %v73, %v77
  %v80 = vadd.f32 %v74, %v77
  %v81 = vpack.c.bf16 %v80, %v79
  %v82 = vld [vmem:[%s3] sm:$0xf]
  %v83 = vld [vmem:[%s3 + $0x4] sm:$0xf]
  %v84 = vld [vmem:[%s3 + $0x8] sm:$0xf]
  %v85 = vld [vmem:[%s3 + $0xc] sm:$0xf]
  %v86 = vld [vmem:[%s3 + $0x10] sm:$0xf]
  %v87 = vld [vmem:[%s3 + $0x14] sm:$0xf]
  %v88 = vld [vmem:[%s3 + $0x18] sm:$0xf]
  %v89 = vld [vmem:[%s3 + $0x1c] sm:$0xf]
  %v90 = vld [vmem:[%s3 + $0x20] sm:$0xf]
  %v91 = vld [vmem:[%s3 + $0x24] sm:$0xf]
  %v92 = vld [vmem:[%s3 + $0x28] sm:$0xf]
  %v93 = vld [vmem:[%s3 + $0x2c] sm:$0xf]
  %v94 = vld [vmem:[%s3 + $0x30] sm:$0xf]
  %v95 = vld [vmem:[%s3 + $0x34] sm:$0xf]
  %v96 = vld [vmem:[%s3 + $0x38] sm:$0xf]
  %v97 = vld [vmem:[%s3 + $0x3c] sm:$0xf]
  %v114 = vunpack.c.l.b16 %v82
  %v115 = vunpack.c.l.b16 %v83
  %v116 = vunpack.c.l.b16 %v84
  %v117 = vunpack.c.l.b16 %v85
  %v118 = vunpack.c.l.b16 %v86
  %v119 = vunpack.c.l.b16 %v87
  %v120 = vunpack.c.l.b16 %v88
  %v121 = vunpack.c.l.b16 %v89
  %v122 = vunpack.c.l.b16 %v90
  %v123 = vunpack.c.l.b16 %v91
  %v124 = vunpack.c.l.b16 %v92
  %v125 = vunpack.c.l.b16 %v93
  %v126 = vunpack.c.l.b16 %v94
  %v127 = vunpack.c.l.b16 %v95
  %v128 = vunpack.c.l.b16 %v96
  %v129 = vunpack.c.l.b16 %v97
  %v130 = vpack.c.b16 %v115, %v114
  %v131 = vpack.c.b16 %v117, %v116
  %v132 = vpack.c.b16 %v119, %v118
  %v133 = vpack.c.b16 %v121, %v120
  %v134 = vpack.c.b16 %v123, %v122
  %v135 = vpack.c.b16 %v125, %v124
  %v136 = vpack.c.b16 %v127, %v126
  %v137 = vpack.c.b16 %v129, %v128
  %146 = vmatpush.bf16.msra.mxu0 %v137
  %147 = vmatpush.bf16.msra.mxu0 %v136
  %148 = vmatpush.bf16.msra.mxu0 %v135
  %149 = vmatpush.bf16.msra.mxu0 %v134
  %150 = vmatpush.bf16.msra.mxu0 %v133
  %151 = vmatpush.bf16.msra.mxu0 %v132
  %152 = vmatpush.bf16.msra.mxu0 %v131
  %153 = vmatpush.bf16.msra.mxu0 %v130
  %154 = vmatmul.bf16.gmra.mxu0 %v81
  %v155 = vpop.f32.mrf.mxu0
  %v156 = vadd.f32 %v20, %v155
  %v157 = vpop.f32.mrf.mxu0
  %v158 = vadd.f32 %v21, %v157
  %159 = vdwg.mxu0
  %v160 = vld [vmem:[%s4] sm:$0x1]
  %v162 = vperm.slane %v160, 0
  %v164 = vadd.f32 %v156, %v162
  %v165 = vadd.f32 %v158, %v162
  %166 = vst [vmem:[%s5] sm:$0xff] %v164
  %167 = vst [vmem:[%s5 + $0x8] sm:$0xff] %v165
  // Predicated region
  $region22: #{mixer_model_forward.2} parent=0 // pred_check
    _
  $region23: #{mixer_model_forward.2} parent=0 // pred_check_branch
    %169 = sbr.rel (0) target = $region25
  $region24: #{mixer_model_forward.2} parent=0 // pred_region
    _
  $region25: #{mixer_model_forward.2} parent=0 // pred_fallthru
    _
  // Predicated region
  $region26: #{mixer_model_forward.2} parent=0 // pred_check
    _
  $region27: #{mixer_model_forward.2} parent=0 // pred_check_branch
    %171 = sbr.rel (0) target = $region29
  $region28: #{mixer_model_forward.2} parent=0 // pred_region
    _
  $region29: #{mixer_model_forward.2} parent=0 // pred_fallthru
    _

</llo_original>
